<compile_context>
chip_gen: v7x
topology: tpu7x:2x2x1
jax: 0.10.0
libtpu: 0.0.40
codegen_flags: <defaults>
</compile_context>

<pallas_src>
import jax
import jax.numpy as jnp
from jax import lax
from jax.experimental import pallas as pl
from jax.experimental.pallas import tpu as pltpu

_MIB = 1024 * 1024


def _tpu_config():
    """(max query tile, vmem_limit_bytes), derived from VMEM capacity.

    Conservative (v7x-safe) default if the hardware query is unavailable.
    """
    max_tq, vmem_limit = 256, 52 * _MIB            # v7x-class: 64 MiB per TC
    try:
        cap = int(pltpu.get_tpu_info().vmem_capacity_bytes)
        if cap > 64 * _MIB:                        # v5e / v6e: 128 MiB VMEM
            max_tq, vmem_limit = 512, 100 * _MIB
    except Exception:
        pass
    return max_tq, vmem_limit


def _pick_query_tile(n, max_tq):
    """Largest tile in {max_tq, 256, 128} that divides N (else N itself)."""
    for t in (max_tq, 256, 128):
        if t < n and n % t == 0:
            return t
    return n


def self_attn_pallas(x_nchw, wq, bq, wk, bk, wv, bv, gamma, *, tq=None,
                     use_bf16=False):
    """SAGAN self-attention forward.

    x_nchw : (B, C, H, W) float32
    wq, wk : (C, C//8)   1x1-conv weights in (in, out) layout
    wv     : (C, C)
    bq, bk : (C//8,)     biases
    bv     : (C,)
    gamma  : (1,)
    use_bf16 : bf16 matmul inputs / K,V scratch / attention writeback
               (f32 accumulation + f32 softmax).  False -> reference-exact f32.

    Returns (out (B, C, H, W) f32, attention (B, N, N)) with N = H*W.
    """
    B, C, H, W = x_nchw.shape
    N = H * W
    Cp = wq.shape[1]
    Ct = 2 * Cp + C

    max_tq, vmem_limit = _tpu_config()
    TQ = tq if tq is not None else _pick_query_tile(N, max_tq)
    assert N % TQ == 0, "query tile must divide N"
    num_q_tiles = N // TQ

    compute_dtype = jnp.bfloat16 if use_bf16 else jnp.float32
    attn_dtype = jnp.bfloat16 if use_bf16 else jnp.float32
    approx_recip = bool(use_bf16)

    # (B, C, H, W) -> (B, C, N): pure reshape, data stays channel-major.
    x_cn = x_nchw.reshape(B, C, N).astype(jnp.float32)

    # Fused, pre-transposed projection weights: ONE (Ct, C) @ (C, N) matmul
    # produces Q, K and V together, already channel-major.
    w_qkv_t = jnp.transpose(
        jnp.concatenate([wq, wk, wv], axis=1)).astype(jnp.float32)          # (Ct, C)
    b_qkv = jnp.concatenate(
        [bq.reshape(-1), bk.reshape(-1), bv.reshape(-1)]
    ).astype(jnp.float32).reshape(Ct, 1)                                    # (Ct, 1)
    gamma = gamma.astype(jnp.float32).reshape(1)

    def kernel(xt_ref, x_hbm, w_ref, b_ref, gamma_ref, out_ref, attn_ref,
               q_s, k_s, v_s):
        b = pl.program_id(0)
        qi = pl.program_id(1)

        # ---- Fused QKV projection, once per batch element.  x is pulled from
        # HBM into a scoped VMEM buffer (released after the projection) so the
        # full image is never double-buffered across the whole batch element.
        @pl.when(qi == 0)
        def _():
            def _project(x_buf, sem):
                cp = pltpu.make_async_copy(x_hbm.at[b], x_buf, sem)
                cp.start()
                cp.wait()
                qkv = lax.dot_general(
                    w_ref[...], x_buf[...], (((1,), (0,)), ((), ())),
                    preferred_element_type=jnp.float32) + b_ref[...]        # (Ct, N)
                # Channel-major slices -> zero transposes at projection time.
                q_s[...] = qkv[0:Cp, :]
                k_s[...] = qkv[Cp:2 * Cp, :].astype(k_s.dtype)
                v_s[...] = qkv[2 * Cp:, :].astype(v_s.dtype)

            pl.run_scoped(_project,
                          pltpu.VMEM((C, N), jnp.float32),
                          pltpu.SemaphoreType.DMA)

        q_start = pl.multiple_of(qi * TQ, TQ)

        # Tiny (Cp, TQ) -> (TQ, Cp) transpose per step; Q stays channel-major
        # so its scratch avoids (N, Cp)->(N, 128) lane padding.
        q_tile = jnp.transpose(q_s[:, pl.ds(q_start, TQ)]).astype(compute_dtype)

        # energy[i, j] = q_i . k_j   (f32 accumulation on the MXU)
        energy = lax.dot_general(
            q_tile, k_s[...], (((1,), (0,)), ((), ())),
            preferred_element_type=jnp.float32)                             # (TQ, N)

        # Exact softmax over the full key axis (dim=-1), f32 throughout.
        m = jnp.max(energy, axis=-1, keepdims=True)
        p = jnp.exp(energy - m)                                             # energy dead
        attn = p * pl.reciprocal(jnp.sum(p, axis=-1, keepdims=True),
                                 approx=approx_recip)
        attn_ref[0] = attn.astype(attn_ref.dtype)                           # lane-dense stripe

        # out[c, i] = sum_j V[c, j] * attn[i, j]  — trans_b matmul, result is
        # already channel-major (C, TQ): no per-step output transpose.
        o_ct = lax.dot_general(
            v_s[...], attn.astype(compute_dtype), (((1,), (1,)), ((), ())),
            preferred_element_type=jnp.float32)                             # (C, TQ)

        out_ref[0] = gamma_ref[0] * o_ct + xt_ref[0]                        # (C, TQ)

    grid = (B, num_q_tiles)
    out_cn, attn = pl.pallas_call(
        kernel,
        out_shape=(
            jax.ShapeDtypeStruct((B, C, N), jnp.float32),
            jax.ShapeDtypeStruct((B, N, N), attn_dtype),
        ),
        grid_spec=pltpu.PrefetchScalarGridSpec(
            num_scalar_prefetch=0,
            grid=grid,
            in_specs=[
                # Small per-tile residual slice (pipelined).
                pl.BlockSpec((1, C, TQ), lambda b, q: (b, 0, q)),
                # Full image stays in HBM; only touched by the qi==0 DMA.
                pl.BlockSpec(memory_space=pl.ANY),
                # Fused projection weight / bias (constant across the grid).
                pl.BlockSpec((Ct, C), lambda b, q: (0, 0)),
                pl.BlockSpec((Ct, 1), lambda b, q: (0, 0)),
                # gamma scalar.
                pl.BlockSpec(memory_space=pltpu.MemorySpace.SMEM),
            ],
            out_specs=[
                pl.BlockSpec((1, C, TQ), lambda b, q: (b, 0, q)),           # out  (B, C, N)
                pl.BlockSpec((1, TQ, N), lambda b, q: (b, q, 0)),           # attn (B, N, N)
            ],
            scratch_shapes=[
                pltpu.VMEM((Cp, N), jnp.float32),     # Q  (channel-major, resident)
                pltpu.VMEM((Cp, N), compute_dtype),   # K  (channel-major, resident)
                pltpu.VMEM((C, N), compute_dtype),    # V  (channel-major, resident)
            ],
        ),
        compiler_params=pltpu.CompilerParams(
            dimension_semantics=("parallel", "arbitrary"),
            vmem_limit_bytes=vmem_limit,
        ),
    )(x_cn, x_cn, w_qkv_t, b_qkv, gamma)

    out = out_cn.reshape(B, C, H, W)   # free reshape — already channel-major
    return out, attn


def self_attn_reference(x_nchw, wq, bq, wk, bk, wv, bv, gamma):
    """Pure-JAX reference mirroring the PyTorch forward."""
    B, C, H, W = x_nchw.shape
    N = H * W
    hp = lax.Precision.HIGHEST
    x_nc = jnp.transpose(x_nchw.reshape(B, C, N), (0, 2, 1))               # (B, N, C)
    q = jnp.einsum("bnc,cp->bnp", x_nc, wq, precision=hp) + bq             # (B, N, C//8)
    k = jnp.einsum("bnc,cp->bnp", x_nc, wk, precision=hp) + bk             # (B, N, C//8)
    v = jnp.einsum("bnc,cd->bnd", x_nc, wv, precision=hp) + bv             # (B, N, C)
    energy = jnp.einsum("bic,bjc->bij", q, k, precision=hp)                # (B, N, N)
    attn = jax.nn.softmax(energy, axis=-1)
    o = jnp.einsum("bij,bjc->bic", attn, v, precision=hp)                  # (B, N, C)
    out_nc = gamma[0] * o + x_nc
    out = jnp.transpose(out_nc, (0, 2, 1)).reshape(B, C, H, W)
    return out, attn


if __name__ == "__main__":
    # Small shapes consistent with the module: in_dim divisible by 8;
    # N = 16*16 = 256 so the query axis is tiled (TQ = 128 -> 2 tiles).
    B, C, H, W = 2, 32, 16, 16
    Cp = C // 8
    N = H * W

    key = jax.random.PRNGKey(0)
    kx, k1, k2, k3, k4, k5, k6 = jax.random.split(key, 7)

    x = jax.random.normal(kx, (B, C, H, W), dtype=jnp.float32)

    # Conv2d(C, C//8, 1) weights: PyTorch layout (out, in, 1, 1) -> pass as (in, out).
    wq = 0.1 * jax.random.normal(k1, (C, Cp), dtype=jnp.float32)
    bq = 0.1 * jax.random.normal(k2, (Cp,), dtype=jnp.float32)
    wk = 0.1 * jax.random.normal(k3, (C, Cp), dtype=jnp.float32)
    bk = 0.1 * jax.random.normal(k4, (Cp,), dtype=jnp.float32)
    wv = 0.1 * jax.random.normal(k5, (C, C), dtype=jnp.float32)
    bv = 0.1 * jax.random.normal(k6, (C,), dtype=jnp.float32)
    # PyTorch init is gamma = zeros(1); use a nonzero value so the attention
    # path actually contributes to the checked output.
    gamma = jnp.full((1,), 0.7, dtype=jnp.float32)

    out_expected, attn_expected = self_attn_reference(x, wq, bq, wk, bk, wv, bv, gamma)

    # 1) Exact f32 path — must match the PyTorch-style reference tightly.
    out, attn = self_attn_pallas(x, wq, bq, wk, bk, wv, bv, gamma, use_bf16=False)
    out = jax.block_until_ready(out)
    attn = jax.block_until_ready(attn)
    assert out.shape == (B, C, H, W)
    assert attn.shape == (B, N, N)
    assert jnp.allclose(attn, attn_expected, atol=1e-4, rtol=1e-4), \
        float(jnp.max(jnp.abs(attn - attn_expected)))
    assert jnp.allclose(out, out_expected, atol=1e-4, rtol=1e-4), \
        float(jnp.max(jnp.abs(out - out_expected)))

    # 2) Fast path — bf16 matmul inputs + bf16 attention writeback (looser tol).
    out_f, attn_f = self_attn_pallas(x, wq, bq, wk, bk, wv, bv, gamma, use_bf16=True)
    out_f = jax.block_until_ready(out_f)
    attn_f = jax.block_until_ready(attn_f)
    assert attn_f.dtype == jnp.bfloat16
    assert jnp.allclose(attn_f.astype(jnp.float32), attn_expected, atol=5e-3, rtol=5e-2), \
        float(jnp.max(jnp.abs(attn_f.astype(jnp.float32) - attn_expected)))
    assert jnp.allclose(out_f, out_expected, atol=5e-2, rtol=5e-2), \
        float(jnp.max(jnp.abs(out_f - out_expected)))

    print("KERNEL_OK")
</pallas_src>

<mosaic_0001>
module attributes {stable_mosaic.version = 11 : i64} {
  func.func @kernel(%arg0: i32, %arg1: i32, %arg2: memref<1x32x128xf32, #tpu.memory_space<vmem>>, %arg3: memref<2x32x256xf32, #tpu.memory_space<any>>, %arg4: memref<40x32xf32, #tpu.memory_space<vmem>>, %arg5: memref<40x1xf32, #tpu.memory_space<vmem>>, %arg6: memref<1xf32, #tpu.memory_space<smem>>, %arg7: memref<1x32x128xf32, #tpu.memory_space<vmem>>, %arg8: memref<1x128x256xf32, #tpu.memory_space<vmem>>, %arg9: memref<4x256xf32, #tpu.memory_space<vmem>>, %arg10: memref<4x256xf32, #tpu.memory_space<vmem>>, %arg11: memref<32x256xf32, #tpu.memory_space<vmem>>) attributes {dimension_semantics = [#tpu.dimension_semantics<parallel>, #tpu.dimension_semantics<arbitrary>], iteration_bounds = array<i64: 2, 2>, scalar_prefetch = 0 : i64, scratch_operands = 3 : i64, tpu.core_type = #tpu.core_type<tc>, window_params = [{transform_indices = @transform_0, window_bounds = array<i64: 1, 32, 128>}, {}, {pipeline_mode = #tpu.pipeline_mode<synchronous>, transform_indices = @transform_2, window_bounds = array<i64: 40, 32>}, {pipeline_mode = #tpu.pipeline_mode<synchronous>, transform_indices = @transform_3, window_bounds = array<i64: 40, 1>}, {transform_indices = @transform_4, window_bounds = array<i64: 1>}, {transform_indices = @transform_5, window_bounds = array<i64: 1, 32, 128>}, {transform_indices = @transform_6, window_bounds = array<i64: 1, 128, 256>}]} {
    %c0_i32 = arith.constant 0 : i32
    %0 = arith.cmpi eq, %arg1, %c0_i32 : i32
    %1 = arith.extui %0 : i1 to i32
    %c0_i32_0 = arith.constant 0 : i32
    %2 = arith.cmpi ne, %1, %c0_i32_0 : i32
    scf.if %2 {
      "tpu.region"() ({
        %alloca = memref.alloca() : memref<32x256xf32, #tpu.memory_space<vmem>>
        %34 = tpu.sem_alloc : memref<!tpu.dma_semaphore, #tpu.memory_space<semaphore_mem>>
        %c0_i32_18 = arith.constant 0 : i32
        %c0_i32_19 = arith.constant 0 : i32
        %35 = tpu.memref_slice %arg3[%arg0, %c0_i32_18, %c0_i32_19] : memref<2x32x256xf32, #tpu.memory_space<any>> -> memref<1x32x256xf32, #tpu.memory_space<any>>
        %36 = tpu.memref_squeeze %35 : memref<1x32x256xf32, #tpu.memory_space<any>> -> memref<32x256xf32, #tpu.memory_space<any>>
        tpu.enqueue_dma source(%36 : memref<32x256xf32, #tpu.memory_space<any>>) target(%alloca : memref<32x256xf32, #tpu.memory_space<vmem>>) target_semaphore(%34 : memref<!tpu.dma_semaphore, #tpu.memory_space<semaphore_mem>>)
        %c0_i32_20 = arith.constant 0 : i32
        %c0_i32_21 = arith.constant 0 : i32
        %37 = tpu.memref_slice %arg3[%arg0, %c0_i32_20, %c0_i32_21] : memref<2x32x256xf32, #tpu.memory_space<any>> -> memref<1x32x256xf32, #tpu.memory_space<any>>
        %38 = tpu.memref_squeeze %37 : memref<1x32x256xf32, #tpu.memory_space<any>> -> memref<32x256xf32, #tpu.memory_space<any>>
        tpu.wait_dma2 semaphore(%34 : memref<!tpu.dma_semaphore, #tpu.memory_space<semaphore_mem>>) src(%38 : memref<32x256xf32, #tpu.memory_space<any>>) dst(%alloca : memref<32x256xf32, #tpu.memory_space<vmem>>)
        %c0_22 = arith.constant 0 : index
        %c0_23 = arith.constant 0 : index
        %39 = vector.load %arg4[%c0_22, %c0_23] : memref<40x32xf32, #tpu.memory_space<vmem>>, vector<40x32xf32>
        %c0_24 = arith.constant 0 : index
        %c0_25 = arith.constant 0 : index
        %40 = vector.load %alloca[%c0_24, %c0_25] : memref<32x256xf32, #tpu.memory_space<vmem>>, vector<32x256xf32>
        %cst_26 = arith.constant dense<0.000000e+00> : vector<40x256xf32>
        %41 = tpu.matmul %39, %40, %cst_26 {dimension_numbers = #tpu.dot_dimension_numbers<[1], [0], [0], [1], [0, 0, 1, 1], [], []>} : vector<40x32xf32>, vector<32x256xf32>, vector<40x256xf32> -> vector<40x256xf32>
        %c0_27 = arith.constant 0 : index
        %c0_28 = arith.constant 0 : index
        %42 = vector.load %arg5[%c0_27, %c0_28] : memref<40x1xf32, #tpu.memory_space<vmem>>, vector<40x1xf32>
        %43 = vector.broadcast %42 : vector<40x1xf32> to vector<40x256xf32>
        %44 = arith.addf %41, %43 : vector<40x256xf32>
        %45 = vector.extract_strided_slice %44 {offsets = [0, 0], sizes = [4, 256], strides = [1, 1]} : vector<40x256xf32> to vector<4x256xf32>
        %c0_29 = arith.constant 0 : index
        %c0_30 = arith.constant 0 : index
        %46 = vector.load %arg9[%c0_29, %c0_30] : memref<4x256xf32, #tpu.memory_space<vmem>>, vector<4x256xf32>
        tpu.vector_store %arg9[%c0_29, %c0_30], %45 {strides = array<i32>} : memref<4x256xf32, #tpu.memory_space<vmem>>, vector<4x256xf32>,
        %47 = vector.extract_strided_slice %44 {offsets = [4, 0], sizes = [4, 256], strides = [1, 1]} : vector<40x256xf32> to vector<4x256xf32>
        %c0_31 = arith.constant 0 : index
        %c0_32 = arith.constant 0 : index
        %48 = vector.load %arg10[%c0_31, %c0_32] : memref<4x256xf32, #tpu.memory_space<vmem>>, vector<4x256xf32>
        tpu.vector_store %arg10[%c0_31, %c0_32], %47 {strides = array<i32>} : memref<4x256xf32, #tpu.memory_space<vmem>>, vector<4x256xf32>,
        %49 = vector.extract_strided_slice %44 {offsets = [8, 0], sizes = [32, 256], strides = [1, 1]} : vector<40x256xf32> to vector<32x256xf32>
        %c0_33 = arith.constant 0 : index
        %c0_34 = arith.constant 0 : index
        %50 = vector.load %arg11[%c0_33, %c0_34] : memref<32x256xf32, #tpu.memory_space<vmem>>, vector<32x256xf32>
        tpu.vector_store %arg11[%c0_33, %c0_34], %49 {strides = array<i32>} : memref<32x256xf32, #tpu.memory_space<vmem>>, vector<32x256xf32>,
        tpu.yield
      }) : () -> ()
    } else {
    }
    %c128_i32 = arith.constant 128 : i32
    %3 = arith.muli %arg1, %c128_i32 : i32
    %4 = tpu.assume_multiple %3, 128 : i32
    %c0 = arith.constant 0 : index
    %5 = arith.index_cast %4 : i32 to index
    %6 = vector.load %arg9[%c0, %5] : memref<4x256xf32, #tpu.memory_space<vmem>>, vector<4x128xf32>
    %7 = tpu.transpose %6, [1, 0] : vector<4x128xf32> -> vector<128x4xf32>
    %c0_1 = arith.constant 0 : index
    %c0_2 = arith.constant 0 : index
    %8 = vector.load %arg10[%c0_1, %c0_2] : memref<4x256xf32, #tpu.memory_space<vmem>>, vector<4x256xf32>
    %cst = arith.constant dense<0.000000e+00> : vector<128x256xf32>
    %9 = tpu.matmul %7, %8, %cst {dimension_numbers = #tpu.dot_dimension_numbers<[1], [0], [0], [1], [0, 0, 1, 1], [], []>} : vector<128x4xf32>, vector<4x256xf32>, vector<128x256xf32> -> vector<128x256xf32>
    %cst_3 = arith.constant dense<0xFF800000> : vector<128xf32>
    %10 = vector.multi_reduction <maximumf>, %9, %cst_3 [1] : vector<128x256xf32> to vector<128xf32>
    %11 = vector.shape_cast %10 : vector<128xf32> to vector<128x1xf32>
    %12 = vector.broadcast %11 : vector<128x1xf32> to vector<128x256xf32>
    %13 = arith.subf %9, %12 : vector<128x256xf32>
    %14 = math.exp %13 : vector<128x256xf32>
    %cst_4 = arith.constant dense<0.000000e+00> : vector<128xf32>
    %15 = vector.multi_reduction <add>, %14, %cst_4 [1] : vector<128x256xf32> to vector<128xf32>
    %16 = vector.shape_cast %15 : vector<128xf32> to vector<128x1xf32>
    %17 = tpu.reciprocal %16 : vector<128x1xf32> -> vector<128x1xf32>
    %18 = vector.broadcast %17 : vector<128x1xf32> to vector<128x256xf32>
    %19 = arith.mulf %14, %18 : vector<128x256xf32>
    %c0_5 = arith.constant 0 : index
    %c0_6 = arith.constant 0 : index
    %c0_7 = arith.constant 0 : index
    %20 = vector.load %arg8[%c0_5, %c0_6, %c0_7] : memref<1x128x256xf32, #tpu.memory_space<vmem>>, vector<1x128x256xf32>
    %21 = vector.shape_cast %20 : vector<1x128x256xf32> to vector<128x256xf32>
    %22 = vector.shape_cast %19 : vector<128x256xf32> to vector<1x128x256xf32>
    tpu.vector_store %arg8[%c0_5, %c0_6, %c0_7], %22 {strides = array<i32>} : memref<1x128x256xf32, #tpu.memory_space<vmem>>, vector<1x128x256xf32>,
    %c0_8 = arith.constant 0 : index
    %c0_9 = arith.constant 0 : index
    %23 = vector.load %arg11[%c0_8, %c0_9] : memref<32x256xf32, #tpu.memory_space<vmem>>, vector<32x256xf32>
    %cst_10 = arith.constant dense<0.000000e+00> : vector<32x128xf32>
    %24 = tpu.matmul %23, %19, %cst_10 {dimension_numbers = #tpu.dot_dimension_numbers<[1], [1], [0], [0], [0, 0, 1, 0], [], []>} : vector<32x256xf32>, vector<128x256xf32>, vector<32x128xf32> -> vector<32x128xf32>
    %c0_11 = arith.constant 0 : index
    %25 = memref.load %arg6[%c0_11] : memref<1xf32, #tpu.memory_space<smem>>
    %26 = vector.broadcast %25 : f32 to vector<32x128xf32>
    %27 = arith.mulf %26, %24 : vector<32x128xf32>
    %c0_12 = arith.constant 0 : index
    %c0_13 = arith.constant 0 : index
    %c0_14 = arith.constant 0 : index
    %28 = vector.load %arg2[%c0_12, %c0_13, %c0_14] : memref<1x32x128xf32, #tpu.memory_space<vmem>>, vector<1x32x128xf32>
    %29 = vector.shape_cast %28 : vector<1x32x128xf32> to vector<32x128xf32>
    %30 = arith.addf %27, %29 : vector<32x128xf32>
    %c0_15 = arith.constant 0 : index
    %c0_16 = arith.constant 0 : index
    %c0_17 = arith.constant 0 : index
    %31 = vector.load %arg7[%c0_15, %c0_16, %c0_17] : memref<1x32x128xf32, #tpu.memory_space<vmem>>, vector<1x32x128xf32>
    %32 = vector.shape_cast %31 : vector<1x32x128xf32> to vector<32x128xf32>
    %33 = vector.shape_cast %30 : vector<32x128xf32> to vector<1x32x128xf32>
    tpu.vector_store %arg7[%c0_15, %c0_16, %c0_17], %33 {strides = array<i32>} : memref<1x32x128xf32, #tpu.memory_space<vmem>>, vector<1x32x128xf32>,
    return
  }
  func.func @transform_0(%arg0: i32, %arg1: i32) -> (i32, i32, i32) {
    %c0_i32 = arith.constant 0 : i32
    %c0_i32_0 = arith.constant 0 : i32
    return %arg0, %c0_i32, %arg1 : i32, i32, i32
  }
  func.func @transform_2(%arg0: i32, %arg1: i32) -> (i32, i32) {
    %c0_i32 = arith.constant 0 : i32
    %c0_i32_0 = arith.constant 0 : i32
    %c0_i32_1 = arith.constant 0 : i32
    return %c0_i32, %c0_i32_0 : i32, i32
  }
  func.func @transform_3(%arg0: i32, %arg1: i32) -> (i32, i32) {
    %c0_i32 = arith.constant 0 : i32
    %c0_i32_0 = arith.constant 0 : i32
    %c0_i32_1 = arith.constant 0 : i32
    return %c0_i32, %c0_i32_0 : i32, i32
  }
  func.func @transform_4(%arg0: i32, %arg1: i32) -> i32 {
    %c0_i32 = arith.constant 0 : i32
    %c0_i32_0 = arith.constant 0 : i32
    return %c0_i32 : i32
  }
  func.func @transform_5(%arg0: i32, %arg1: i32) -> (i32, i32, i32) {
    %c0_i32 = arith.constant 0 : i32
    %c0_i32_0 = arith.constant 0 : i32
    return %arg0, %c0_i32, %arg1 : i32, i32, i32
  }
  func.func @transform_6(%arg0: i32, %arg1: i32) -> (i32, i32, i32) {
    %c0_i32 = arith.constant 0 : i32
    %c0_i32_0 = arith.constant 0 : i32
    return %arg0, %arg1, %c0_i32 : i32, i32, i32
  }
}

</mosaic_0001>

<llo_original>
// kernel: tpu_custom_call.1
$region0: #{tpu_custom_call.1}
  #allocation0 [shape = 'u32[]', space=smem, size = 0x4, offset = 0x4, fixed_abs, tag = 'smem constant byte address 0x4 - core index']
  #allocation1 [shape = 'u32[144,128]{1,0:T(1,128)}', space=vmem, size = 0x12000, scoped, tag = 'internal scratch']
  #allocation2 [shape = 'f32[4,256]{1,0:T(4,128)}', space=vmem, size = 0x1000, scoped, tag = 'scratch operand']
  #allocation3 [shape = 'f32[4,256]{1,0:T(4,128)}', space=vmem, size = 0x1000, scoped, tag = 'scratch operand']
  #allocation4 [shape = 'f32[32,256]{1,0:T(8,128)}', space=vmem, size = 0x8000, scoped, tag = 'scratch operand']
  #allocation5 [shape = 'f32[1]{0:T(128)S(6)}', space=smem, size = 0x200, scoped, tag = 'scoped memory for tpu_custom_call.1']
  #allocation14 [shape = 's32[]', space=sflag, size = 0x4, offset = 0, fixed_abs, tag = 'sflag constant byte address 0x0 - dummy sync flag']
  #allocation15 [shape = 's32[]', space=sflag, size = 0x4, offset = 0, fixed_abs, tag = 'sflag constant byte address 0x0 - dummy sync flag']
  #allocation16 [shape = 'u32[]', space=smem, size = 0x4, offset = 0x44, fixed_abs, tag = 'smem constant byte address 0x44 - assertion arg 0']
  #allocation17 [shape = 'u32[]', space=smem, size = 0x4, offset = 0x48, fixed_abs, tag = 'smem constant byte address 0x48 - assertion arg 1']
  %s0 = inlined_call_operand.hbm [shape: f32[2,32,256], index: 0, kind: input, shape index: {}]
  %s1 = inlined_call_operand.hbm [shape: f32[2,32,256], index: 1, kind: input, shape index: {}]
  %s2 = inlined_call_operand.vmem [shape: f32[40,32], index: 2, kind: input, shape index: {}]
  %s3 = inlined_call_operand.vmem [shape: f32[40,1], index: 3, kind: input, shape index: {}]
  %s4 = inlined_call_operand.<no memory space> [shape: f32[1], index: 4, kind: input, shape index: {}]
  %s5 = inlined_call_operand.hbm [shape: f32[2,32,256], index: 5, kind: output, shape index: {0}]
  %s6 = inlined_call_operand.hbm [shape: f32[2,256,256], index: 6, kind: output, shape index: {1}]
  %7 = xla_tuple %s5, %s6
  %s8 = sld [smem:[#allocation0]]
  $region70: #{tpu_custom_call.1} parent=0
    _
  %s10 = ssub.s32 1, %s8
  %s11 = scalar_select 0, %s10, %s8
  %12 = sst [smem:[#allocation5]] %s4
  $region1: #{tpu_custom_call.1} parent=0
    #allocation6 [shape = 'u8[32768]{0}', space=vmem, size = 0x8000, scoped, tag = 'input window, operand 0']
    #allocation7 [shape = 's32[2]{0}', space=sflag, size = 0x8, scoped, tag = 'scoped memory for tpu_custom_call.1']
    #allocation8 [shape = 's32[2]{0}', space=sflag, size = 0x8, scoped, tag = 'scoped memory for tpu_custom_call.1']
    #allocation9 [shape = 'u8[32768]{0}', space=vmem, size = 0x8000, scoped, tag = 'output window, operand 0']
    #allocation10 [shape = 'u8[262144]{0}', space=vmem, size = 0x40000, scoped, tag = 'output window, operand 1']
    #allocation11 [shape = 's32[2]{0}', space=sflag, size = 0x8, scoped, tag = 'scoped memory for tpu_custom_call.1']
    %13 = vsyncpa [#allocation7], 0
    %s14 = scalar_lea.sflag [#allocation7], 1
    %15 = vsyncpa %s14, 0
    %16 = vsyncpa [#allocation8], 0
    %s17 = scalar_lea.sflag [#allocation8], 1
    %18 = vsyncpa %s17, 0
    %19 = vsyncpa [#allocation11], 0
    %s20 = scalar_lea.sflag [#allocation11], 1
    %21 = vsyncpa %s20, 0
    loop: start=0, step=1, limit=6
    $region2: #{tpu_custom_call.1} parent=1 // loop_pre_header
      _
    $region3: #{tpu_custom_call.1} parent=1 // loop_header
      %s23 = sphi 0, %s27
      %p24 = scmp.ge.s32.totalorder %s23, 6
      %s30 = sphi 0, %s42
      %s31 = sphi 0, %s38
      %s32 = sphi 0, %s30
      %s33 = sphi 0, %s31
      %s34 = sphi 0, %s32
      %s35 = sphi 0, %s33
      %s47 = sphi 0, %s49
      %s50 = sphi 0, %s47
      %s51 = sphi 0, %s50
      %s67 = sphi 0, %s51
      %s71 = sphi 0, %s71
      %s73 = sphi 0, %s71
      %s74 = sphi 0, %s73
      %s88 = sphi 0, %s74
      %s92 = sphi 0, %s92
      %s94 = sphi 0, %s92
      %s95 = sphi 0, %s94
      %s109 = sphi 0, %s95
      %s113 = sphi 0, %s113
      %s115 = sphi 0, %s113
      %s116 = sphi 0, %s115
      %s130 = sphi 0, %s116
      %s138 = sphi 0, %s140
      %s141 = sphi 0, %s138
      %s142 = sphi 0, %s141
      %s158 = sphi 0, %s142
      %s166 = sphi 0, %s168
      %s169 = sphi 0, %s166
      %s170 = sphi 0, %s169
      %s186 = sphi 0, %s170
    $region4: #{tpu_custom_call.1} parent=1 // loop_header_branch
      %26 = sbr.rel (%p24) target = $region8
    $region5: #{tpu_custom_call.1} parent=1 // loop_body
      %s28 = ssub.s32 %s23, 1
      %s29 = ssub.s32 %s23, 2
      %s36 = sadd.s32 1, %s31
      %p37 = scmp.ge.s32.totalorder %s36, 2
      %s38 = scalar_select %p37, 0, %s36
      %s39 = sadd.s32 1, %s30
      %s40 = scalar_select %p37, %s39, %s30
      %p41 = scmp.ge.s32.totalorder %s40, 2
      %s42 = scalar_select %p41, 0, %s40
      %s43 = ssub.s32 %s30, %s42
      %s44 = ssub.s32 %s31, %s38
      %s45 = sor.u32 %s43, %s44
      %p46 = scmp.eq.s32.totalorder %s45, 0
      %s48 = sadd.s32 %s47, 1
      %s49 = scalar_select %p46, %s47, %s48
      %p52 = pneg %p46
      %p53 = scmp.eq.s32.totalorder %s23, 3
      %p54 = por %p52, %p53
      %p55 = scmp.ne.s32.totalorder %s47, %s50
      %p56 = scmp.eq.s32.totalorder %s23, 0
      %p57 = por %p55, %p56
      %p58 = scmp.ne.s32.totalorder %s47, %s50
      %p59 = scmp.eq.s32.totalorder %s28, 3
      %p60 = por %p58, %p59
      %p61 = scmp.ne.s32.totalorder %s50, %s51
      %p62 = scmp.eq.s32.totalorder %s28, 0
      %p63 = por %p61, %p62
      %p64 = scmp.ne.s32.totalorder %s50, %s51
      %p65 = scmp.eq.s32.totalorder %s29, 3
      %p66 = por %p64, %p65
      %p68 = scmp.ne.s32.totalorder %s51, %s67
      %p69 = scmp.eq.s32.totalorder %s29, 0
      %p70 = por %p68, %p69
      %s72 = sadd.s32 %s71, 1
      %p75 = scmp.eq.s32.totalorder %s23, 3
      %p76 = scmp.ne.s32.totalorder %s71, %s73
      %p77 = scmp.eq.s32.totalorder %s23, 0
      %p78 = por %p76, %p77
      %p79 = scmp.ne.s32.totalorder %s71, %s73
      %p80 = scmp.eq.s32.totalorder %s28, 3
      %p81 = por %p79, %p80
      %p82 = scmp.ne.s32.totalorder %s73, %s74
      %p83 = scmp.eq.s32.totalorder %s28, 0
      %p84 = por %p82, %p83
      %p85 = scmp.ne.s32.totalorder %s73, %s74
      %p86 = scmp.eq.s32.totalorder %s29, 3
      %p87 = por %p85, %p86
      %p89 = scmp.ne.s32.totalorder %s74, %s88
      %p90 = scmp.eq.s32.totalorder %s29, 0
      %p91 = por %p89, %p90
      %s93 = sadd.s32 %s92, 1
      %p96 = scmp.eq.s32.totalorder %s23, 3
      %p97 = scmp.ne.s32.totalorder %s92, %s94
      %p98 = scmp.eq.s32.totalorder %s23, 0
      %p99 = por %p97, %p98
      %p100 = scmp.ne.s32.totalorder %s92, %s94
      %p101 = scmp.eq.s32.totalorder %s28, 3
      %p102 = por %p100, %p101
      %p103 = scmp.ne.s32.totalorder %s94, %s95
      %p104 = scmp.eq.s32.totalorder %s28, 0
      %p105 = por %p103, %p104
      %p106 = scmp.ne.s32.totalorder %s94, %s95
      %p107 = scmp.eq.s32.totalorder %s29, 3
      %p108 = por %p106, %p107
      %p110 = scmp.ne.s32.totalorder %s95, %s109
      %p111 = scmp.eq.s32.totalorder %s29, 0
      %p112 = por %p110, %p111
      %s114 = sadd.s32 %s113, 1
      %p117 = scmp.eq.s32.totalorder %s23, 3
      %p118 = scmp.ne.s32.totalorder %s113, %s115
      %p119 = scmp.eq.s32.totalorder %s23, 0
      %p120 = por %p118, %p119
      %p121 = scmp.ne.s32.totalorder %s113, %s115
      %p122 = scmp.eq.s32.totalorder %s28, 3
      %p123 = por %p121, %p122
      %p124 = scmp.ne.s32.totalorder %s115, %s116
      %p125 = scmp.eq.s32.totalorder %s28, 0
      %p126 = por %p124, %p125
      %p127 = scmp.ne.s32.totalorder %s115, %s116
      %p128 = scmp.eq.s32.totalorder %s29, 3
      %p129 = por %p127, %p128
      %p131 = scmp.ne.s32.totalorder %s116, %s130
      %p132 = scmp.eq.s32.totalorder %s29, 0
      %p133 = por %p131, %p132
      %s134 = ssub.s32 %s30, %s42
      %s135 = ssub.s32 %s31, %s38
      %s136 = sor.u32 %s134, %s135
      %p137 = scmp.eq.s32.totalorder %s136, 0
      %s139 = sadd.s32 %s138, 1
      %s140 = scalar_select %p137, %s138, %s139
      %p143 = pneg %p137
      %p144 = scmp.eq.s32.totalorder %s23, 3
      %p145 = por %p143, %p144
      %p146 = scmp.ne.s32.totalorder %s138, %s141
      %p147 = scmp.eq.s32.totalorder %s23, 0
      %p148 = por %p146, %p147
      %p149 = scmp.ne.s32.totalorder %s138, %s141
      %p150 = scmp.eq.s32.totalorder %s28, 3
      %p151 = por %p149, %p150
      %p152 = scmp.ne.s32.totalorder %s141, %s142
      %p153 = scmp.eq.s32.totalorder %s28, 0
      %p154 = por %p152, %p153
      %p155 = scmp.ne.s32.totalorder %s141, %s142
      %p156 = scmp.eq.s32.totalorder %s29, 3
      %p157 = por %p155, %p156
      %p159 = scmp.ne.s32.totalorder %s142, %s158
      %p160 = scmp.eq.s32.totalorder %s29, 0
      %p161 = por %p159, %p160
      %s162 = ssub.s32 %s30, %s42
      %s163 = ssub.s32 %s31, %s38
      %s164 = sor.u32 %s162, %s163
      %p165 = scmp.eq.s32.totalorder %s164, 0
      %s167 = sadd.s32 %s166, 1
      %s168 = scalar_select %p165, %s166, %s167
      %p171 = pneg %p165
      %p172 = scmp.eq.s32.totalorder %s23, 3
      %p173 = por %p171, %p172
      %p174 = scmp.ne.s32.totalorder %s166, %s169
      %p175 = scmp.eq.s32.totalorder %s23, 0
      %p176 = por %p174, %p175
      %p177 = scmp.ne.s32.totalorder %s166, %s169
      %p178 = scmp.eq.s32.totalorder %s28, 3
      %p179 = por %p177, %p178
      %p180 = scmp.ne.s32.totalorder %s169, %s170
      %p181 = scmp.eq.s32.totalorder %s28, 0
      %p182 = por %p180, %p181
      %p183 = scmp.ne.s32.totalorder %s169, %s170
      %p184 = scmp.eq.s32.totalorder %s29, 3
      %p185 = por %p183, %p184
      %p187 = scmp.ne.s32.totalorder %s170, %s186
      %p188 = scmp.eq.s32.totalorder %s29, 0
      %p189 = por %p187, %p188
      %p190 = scmp.le.s32.totalorder 1, %s23
      %p191 = scmp.lt.s32.totalorder %s23, 5
      %p192 = pnand %p190, %p191
      %p193 = pneg %p192
      // Predicated region
      $region9: #{tpu_custom_call.1} parent=5 // pred_check
        _
      $region10: #{tpu_custom_call.1} parent=5 // pred_check_branch
        %195 = sbr.rel (%p192) target = $region12
      $region11: #{tpu_custom_call.1} parent=5 // pred_region
        %s196 = ssub.s32 %s23, 1
        // Predicated region
        $region13: #{tpu_custom_call.1} parent=11 // pred_check
          %p197 = pneg %p84
        $region14: #{tpu_custom_call.1} parent=11 // pred_check_branch
          %199 = sbr.rel (%p197) target = $region16
        $region15: #{tpu_custom_call.1} parent=11 // pred_region
          _
        $region16: #{tpu_custom_call.1} parent=11 // pred_fallthru
          _
        // Predicated region
        $region17: #{tpu_custom_call.1} parent=11 // pred_check
          %p200 = pneg %p105
        $region18: #{tpu_custom_call.1} parent=11 // pred_check_branch
          %202 = sbr.rel (%p200) target = $region20
        $region19: #{tpu_custom_call.1} parent=11 // pred_region
          _
        $region20: #{tpu_custom_call.1} parent=11 // pred_fallthru
          _
        // Predicated region
        $region21: #{tpu_custom_call.1} parent=11 // pred_check
          %p203 = pneg %p126
        $region22: #{tpu_custom_call.1} parent=11 // pred_check_branch
          %205 = sbr.rel (%p203) target = $region24
        $region23: #{tpu_custom_call.1} parent=11 // pred_region
          _
        $region24: #{tpu_custom_call.1} parent=11 // pred_fallthru
          _
      $region12: #{tpu_custom_call.1} parent=5 // pred_fallthru
        _
      %p206 = scmp.lt.s32.totalorder %s23, 4
      // Predicated region
      $region25: #{tpu_custom_call.1} parent=5 // pred_check
        %p207 = pneg %p206
      $region26: #{tpu_custom_call.1} parent=5 // pred_check_branch
        %209 = sbr.rel (%p207) target = $region28
      $region27: #{tpu_custom_call.1} parent=5 // pred_region
        // Predicated region
        $region29: #{tpu_custom_call.1} parent=27 // pred_check
          %p210 = pneg %p57
        $region30: #{tpu_custom_call.1} parent=27 // pred_check_branch
          %212 = sbr.rel (%p210) target = $region32
        $region31: #{tpu_custom_call.1} parent=27 // pred_region
          %s213 = sand.u32 %s47, 1
          %s214 = scalar_lea.sflag [#allocation7], %s213
          %s215 = sand.u32 %s47, 1
          %s216 = smul.addr %s215, 32
          %s217 = scalar_lea.vmem [#allocation6], %s216
          %s219 = ssub.s32 512, 512
          %220 = vsyncadd %s214, %s219
          %s221 = smul.addr %s30, 8
          %s222 = sadd.s32 %s31, %s221
          %s223 = smul.addr %s222, 128
          %s224 = scalar_lea.hbm %s0, %s223
          %s225 = sshll.u32 %s217, 4
          %s226 = int_to_ptr.vmem [resolvable:$true] %s225
          %231 = dma.hbm_to_vmem [thread:$0]  %s224, 512, %s226, %s214, 256, 128, 8
        $region32: #{tpu_custom_call.1} parent=27 // pred_fallthru
          _
      $region28: #{tpu_custom_call.1} parent=5 // pred_fallthru
        _
      %p232 = scmp.le.s32.totalorder 1, %s23
      %p233 = scmp.lt.s32.totalorder %s23, 5
      %p234 = pnand %p232, %p233
      %p235 = pneg %p234
      // Predicated region
      $region33: #{tpu_custom_call.1} parent=5 // pred_check
        _
      $region34: #{tpu_custom_call.1} parent=5 // pred_check_branch
        %237 = sbr.rel (%p234) target = $region36
      $region35: #{tpu_custom_call.1} parent=5 // pred_region
        %s238 = ssub.s32 %s23, 1
        %s239 = sand.u32 %s50, 1
        %s240 = scalar_lea.sflag [#allocation7], %s239
        %s241 = sand.u32 %s50, 1
        %s242 = smul.addr %s241, 32
        %s243 = scalar_lea.vmem [#allocation6], %s242
        // Predicated region
        $region37: #{tpu_custom_call.1} parent=35 // pred_check
          %p244 = pneg %p63
        $region38: #{tpu_custom_call.1} parent=35 // pred_check_branch
          %246 = sbr.rel (%p244) target = $region40
        $region39: #{tpu_custom_call.1} parent=35 // pred_region
          %247 = dma.done %s240, 512
        $region40: #{tpu_custom_call.1} parent=35 // pred_fallthru
          _
        %s248 = sand.u32 %s50, 1
        %s249 = scalar_lea.sflag [#allocation7], %s248
        %s250 = sand.u32 %s50, 1
        %s251 = smul.addr %s250, 32
        %s252 = scalar_lea.vmem [#allocation6], %s251
        %p253 = pneg %p63
        %p254 = pneg %p60
        %p255 = pneg %p84
        %p256 = pneg %p81
        %p257 = pneg %p105
        %p258 = pneg %p102
        %p259 = pneg %p126
        %p260 = pneg %p123
        %p261 = pneg %p154
        %p262 = pneg %p151
        %s263 = sand.u32 %s141, 1
        %s264 = scalar_lea.sflag [#allocation8], %s263
        %s265 = sand.u32 %s141, 1
        %s266 = smul.addr %s265, 32
        %s267 = scalar_lea.vmem [#allocation9], %s266
        %p268 = pneg %p182
        %p269 = pneg %p179
        %s270 = sand.u32 %s169, 1
        %s271 = scalar_lea.sflag [#allocation11], %s270
        %s272 = sand.u32 %s169, 1
        %s273 = smul.addr %s272, 256
        %s274 = scalar_lea.vmem [#allocation10], %s273
        %s275 = smul.u32 16, %s33
        %p276 = scmp.eq.s32.totalorder %s33, 0
        // Predicated region
        $region41: #{tpu_custom_call.1} parent=35 // pred_check
          %p277 = pneg %p276
        $region42: #{tpu_custom_call.1} parent=35 // pred_check_branch
          %279 = sbr.rel (%p277) target = $region44
        $region43: #{tpu_custom_call.1} parent=35 // pred_region
          $region45: #{tpu_custom_call.1} parent=43
            #allocation12 [shape = 'u8[32768]{0}', space=vmem, size = 0x8000, scoped, tag = 'scoped memory for tpu_custom_call.1']
            #allocation13 [shape = 's32[1]{0}', space=sflag, size = 0x4, scoped, tag = 'scoped memory for tpu_custom_call.1']
            %s280 = smul.u32 %s32, 8
            %s281 = smul.addr %s280, 128
            %s282 = scalar_lea.hbm %s1, %s281
            // Predicated region
            $region46: #{tpu_custom_call.1} parent=45 // pred_check
              _
            $region47: #{tpu_custom_call.1} parent=45 // pred_check_branch
              %284 = sbr.rel target = $region49
            $region48: #{tpu_custom_call.1} parent=45 // pred_region
              %285 = sst [smem:[#allocation16]] [#allocation15]
              %286 = sst [smem:[#allocation17]] [#allocation14]
            $region49: #{tpu_custom_call.1} parent=45 // pred_fallthru
              _
            %288 = shalt.err (0)
            %s290 = sshll.u32 [#allocation12], 4
            %s291 = int_to_ptr.vmem [resolvable:$true] %s290
            %293 = dma.hbm_to_vmem [thread:$0]  %s282, 1024, %s291, [#allocation13]
            %s294 = smul.u32 8, 4
            %s295 = smul.u32 %s294, 2
            %s296 = sshll.u32 %s295, 4
            %297 = dma.done [#allocation13], %s296
            %v298 = vld [vmem:[%s2] sm:$0xff]
            %v299 = vld [vmem:[%s2 + $0x8] sm:$0xff]
            %v300 = vld [vmem:[%s2 + $0x10] sm:$0xff]
            %v301 = vld [vmem:[%s2 + $0x18] sm:$0xff]
            %v302 = vld [vmem:[%s2 + $0x20] sm:$0xff]
            %v303 = vld [vmem:[#allocation12] sm:$0xff]
            %v304 = vld [vmem:[#allocation12 + $0x8] sm:$0xff]
            %v305 = vld [vmem:[#allocation12 + $0x10] sm:$0xff]
            %v306 = vld [vmem:[#allocation12 + $0x18] sm:$0xff]
            %v307 = vld [vmem:[#allocation12 + $0x20] sm:$0xff]
            %v308 = vld [vmem:[#allocation12 + $0x28] sm:$0xff]
            %v309 = vld [vmem:[#allocation12 + $0x30] sm:$0xff]
            %v310 = vld [vmem:[#allocation12 + $0x38] sm:$0xff]
            %v311 = vld [vmem:[%s3] sm:$0xff]
            %v312 = vld [vmem:[%s3 + $0x8] sm:$0xff]
            %v313 = vld [vmem:[%s3 + $0x10] sm:$0xff]
            %v314 = vld [vmem:[%s3 + $0x18] sm:$0xff]
            %v315 = vld [vmem:[%s3 + $0x20] sm:$0xff]
            %317 = vset.pattern.permute.xlu0 0
            %318 = vperm.xlu0 %317, %v311
            %v319 = vpop.permute.xlu0 %318
            %322 = vset.pattern.permute.xlu0 0
            %323 = vperm.xlu0 %322, %v312
            %v324 = vpop.permute.xlu0 %323
            %327 = vset.pattern.permute.xlu0 0
            %328 = vperm.xlu0 %327, %v313
            %v329 = vpop.permute.xlu0 %328
            %332 = vset.pattern.permute.xlu0 0
            %333 = vperm.xlu0 %332, %v314
            %v334 = vpop.permute.xlu0 %333
            %337 = vset.pattern.permute.xlu0 0
            %338 = vperm.xlu0 %337, %v315
            %v339 = vpop.permute.xlu0 %338
            %vm341 = vcmask 261120
            %v343 = vsel %vm341, %v298, 0
            %v346 = vsel %vm341, %v299, 0
            %v349 = vsel %vm341, %v300, 0
            %v352 = vsel %vm341, %v301, 0
            %v355 = vsel %vm341, %v302, 0
            %357 = vmatprep.subr.mxu0 %v304
            %358 = vmatpush1.msra.mxu0 %v303
            %359 = vmatprep.subr.mxu0 %v306
            %360 = vmatpush1.msra.mxu0 %v305
            %361 = vmatprep.subr.mxu0 %v308
            %362 = vmatpush1.msra.mxu0 %v307
            %363 = vmatprep.subr.mxu0 %v310
            %364 = vmatpush1.msra.mxu0 %v309
            %365 = vmatprep.subr.mxu0 0.0
            %366 = vmatpush1.msra.mxu0 0.0
            %367 = vmatprep.subr.mxu0 0.0
            %368 = vmatpush1.msra.mxu0 0.0
            %369 = vmatprep.subr.mxu0 0.0
            %370 = vmatpush1.msra.mxu0 0.0
            %371 = vmatprep.subr.mxu0 0.0
            %372 = vmatpush1.msra.mxu0 0.0
            %373 = vmatprep.subr.mxu0 0.0
            %374 = vmatpush1.msra.mxu0 0.0
            %375 = vmatprep.subr.mxu0 0.0
            %376 = vmatpush1.msra.mxu0 0.0
            %377 = vmatprep.subr.mxu0 0.0
            %378 = vmatpush1.msra.mxu0 0.0
            %379 = vmatprep.subr.mxu0 0.0
            %380 = vmatpush1.msra.mxu0 0.0
            %381 = vmatprep.subr.mxu0 0.0
            %382 = vmatpush1.msra.mxu0 0.0
            %383 = vmatprep.subr.mxu0 0.0
            %384 = vmatpush1.msra.mxu0 0.0
            %385 = vmatprep.subr.mxu0 0.0
            %386 = vmatpush1.msra.mxu0 0.0
            %387 = vmatprep.subr.mxu0 0.0
            %388 = vmatpush1.msra.mxu0 0.0
            %389 = vmatprep.subr.mxu0 0.0
            %390 = vmatpush1.msra.mxu0 0.0
            %391 = vmatprep.subr.mxu0 0.0
            %392 = vmatpush1.msra.mxu0 0.0
            %393 = vmatprep.subr.mxu0 0.0
            %394 = vmatpush1.msra.mxu0 0.0
            %395 = vmatprep.subr.mxu0 0.0
            %396 = vmatpush1.msra.mxu0 0.0
            %397 = vmatprep.subr.mxu0 0.0
            %398 = vmatpush1.msra.mxu0 0.0
            %399 = vmatprep.subr.mxu0 0.0
            %400 = vmatpush1.msra.mxu0 0.0
            %401 = vmatprep.subr.mxu0 0.0
            %402 = vmatpush1.msra.mxu0 0.0
            %403 = vmatprep.subr.mxu0 0.0
            %404 = vmatpush1.msra.mxu0 0.0
            %405 = vmatprep.subr.mxu0 0.0
            %406 = vmatpush1.msra.mxu0 0.0
            %407 = vmatprep.subr.mxu0 0.0
            %408 = vmatpush1.msra.mxu0 0.0
            %409 = vmatprep.subr.mxu0 0.0
            %410 = vmatpush1.msra.mxu0 0.0
            %411 = vmatprep.subr.mxu0 0.0
            %412 = vmatpush1.msra.mxu0 0.0
            %413 = vmatprep.subr.mxu0 0.0
            %414 = vmatpush1.msra.mxu0 0.0
            %415 = vmatprep.subr.mxu0 0.0
            %416 = vmatpush1.msra.mxu0 0.0
            %417 = vmatprep.subr.mxu0 0.0
            %418 = vmatpush1.msra.mxu0 0.0
            %419 = vmatprep.subr.mxu0 0.0
            %420 = vmatpush1.msra.mxu0 0.0
            %421 = vmatprep.mubr.f32.mxu0 0.0
            %422 = vmatmul.mubr.f32.gmra.mrb[0].mxu0 %v343
            %v423 = vpop.f32.mrb[0].mxu0
            %v424 = vadd.f32 %v319, %v423
            %v425 = vpop.f32.mrb[0].mxu0
            %v426 = vadd.f32 %v319, %v425
            %427 = vmatprep.mubr.f32.mxu0 0.0
            %428 = vmatmul.mubr.f32.gmra.mrb[0].mxu0 %v346
            %v429 = vpop.f32.mrb[0].mxu0
            %v430 = vadd.f32 %v324, %v429
            %v431 = vpop.f32.mrb[0].mxu0
            %v432 = vadd.f32 %v324, %v431
            %433 = vmatprep.mubr.f32.mxu0 0.0
            %434 = vmatmul.mubr.f32.gmra.mrb[0].mxu0 %v349
            %v435 = vpop.f32.mrb[0].mxu0
            %v436 = vadd.f32 %v329, %v435
            %v437 = vpop.f32.mrb[0].mxu0
            %v438 = vadd.f32 %v329, %v437
            %439 = vmatprep.mubr.f32.mxu0 0.0
            %440 = vmatmul.mubr.f32.gmra.mrb[0].mxu0 %v352
            %v441 = vpop.f32.mrb[0].mxu0
            %v442 = vadd.f32 %v334, %v441
            %v443 = vpop.f32.mrb[0].mxu0
            %v444 = vadd.f32 %v334, %v443
            %445 = vmatprep.mubr.f32.mxu0 0.0
            %446 = vmatmul.mubr.f32.gmra.mrb[0].mxu0 %v355
            %v447 = vpop.f32.mrb[0].mxu0
            %v448 = vadd.f32 %v339, %v447
            %v449 = vpop.f32.mrb[0].mxu0
            %v450 = vadd.f32 %v339, %v449
            %451 = vdwg.mxu0
            %v454 = vcombine.low %v424, %v426
            %456 = vst [vmem:[#allocation2] sm:$0xff] %v454
            %v457 = vcombine.high %v424, %v426
            %459 = vst [vmem:[#allocation3] sm:$0xff] %v457
            %460 = vst [vmem:[#allocation4] sm:$0xff] %v430
            %461 = vst [vmem:[#allocation4 + $0x8] sm:$0xff] %v432
            %462 = vst [vmem:[#allocation4 + $0x10] sm:$0xff] %v436
            %463 = vst [vmem:[#allocation4 + $0x18] sm:$0xff] %v438
            %464 = vst [vmem:[#allocation4 + $0x20] sm:$0xff] %v442
            %465 = vst [vmem:[#allocation4 + $0x28] sm:$0xff] %v444
            %466 = vst [vmem:[#allocation4 + $0x30] sm:$0xff] %v448
            %467 = vst [vmem:[#allocation4 + $0x38] sm:$0xff] %v450
        $region44: #{tpu_custom_call.1} parent=35 // pred_fallthru
          _
        %s468 = smul.u32 %s33, 128
        %s469 = sshra.s32 %s468, 7
        %s470 = sand.u32 %s468, 127
        %s471 = smul.addr %s469, 4
        %s472 = scalar_lea.vmem [#allocation2], %s471
        %v473 = vld [vmem:[%s472] sm:$0xf]
        %474 = vxpose.xlu0.b32.start [1/16] %v473, 128
        %475 = vxpose.xlu0.b32.cont [2/16] 0.0, 128
        %476 = vxpose.xlu0.b32.cont [3/16] 0.0, 128
        %477 = vxpose.xlu0.b32.cont [4/16] 0.0, 128
        %478 = vxpose.xlu0.b32.cont [5/16] 0.0, 128
        %479 = vxpose.xlu0.b32.cont [6/16] 0.0, 128
        %480 = vxpose.xlu0.b32.cont [7/16] 0.0, 128
        %481 = vxpose.xlu0.b32.cont [8/16] 0.0, 128
        %482 = vxpose.xlu0.b32.cont [9/16] 0.0, 128
        %483 = vxpose.xlu0.b32.cont [10/16] 0.0, 128
        %484 = vxpose.xlu0.b32.cont [11/16] 0.0, 128
        %485 = vxpose.xlu0.b32.cont [12/16] 0.0, 128
        %486 = vxpose.xlu0.b32.cont [13/16] 0.0, 128
        %487 = vxpose.xlu0.b32.cont [14/16] 0.0, 128
        %488 = vxpose.xlu0.b32.cont [15/16] 0.0, 128
        %489 = vxpose.xlu0.b32.end [16/16] 0.0, 128
        %v490 = vpop.trf.xlu0
        %v491 = vpop.trf.xlu0
        %v492 = vpop.trf.xlu0
        %v493 = vpop.trf.xlu0
        %v494 = vpop.trf.xlu0
        %v495 = vpop.trf.xlu0
        %v496 = vpop.trf.xlu0
        %v497 = vpop.trf.xlu0
        %v498 = vpop.trf.xlu0
        %v499 = vpop.trf.xlu0
        %v500 = vpop.trf.xlu0
        %v501 = vpop.trf.xlu0
        %v502 = vpop.trf.xlu0
        %v503 = vpop.trf.xlu0
        %v504 = vpop.trf.xlu0
        %v505 = vpop.trf.xlu0
        %v506 = vld [vmem:[#allocation3] sm:$0xff]
        %v508 = vcombine.high %v506, %v506
        %vm509 = vcmask 31744
        %v511 = vsel %vm509, %v490, 0
        %v514 = vsel %vm509, %v491, 0
        %v517 = vsel %vm509, %v492, 0
        %v520 = vsel %vm509, %v493, 0
        %v523 = vsel %vm509, %v494, 0
        %v526 = vsel %vm509, %v495, 0
        %v529 = vsel %vm509, %v496, 0
        %v532 = vsel %vm509, %v497, 0
        %v535 = vsel %vm509, %v498, 0
        %v538 = vsel %vm509, %v499, 0
        %v541 = vsel %vm509, %v500, 0
        %v544 = vsel %vm509, %v501, 0
        %v547 = vsel %vm509, %v502, 0
        %v550 = vsel %vm509, %v503, 0
        %v553 = vsel %vm509, %v504, 0
        %v556 = vsel %vm509, %v505, 0
        %vm558 = vcmask 1043456
        %v559 = vsel %vm558, %v506, 0
        %v561 = vsel %vm558, %v508, 0
        %563 = vmatprep.subr.mxu0 %v561
        %564 = vmatpush1.msra.mxu0 %v559
        %565 = vmatprep.subr.mxu0 0.0
        %566 = vmatpush1.msra.mxu0 0.0
        %567 = vmatprep.subr.mxu0 0.0
        %568 = vmatpush1.msra.mxu0 0.0
        %569 = vmatprep.subr.mxu0 0.0
        %570 = vmatpush1.msra.mxu0 0.0
        %571 = vmatprep.subr.mxu0 0.0
        %572 = vmatpush1.msra.mxu0 0.0
        %573 = vmatprep.subr.mxu0 0.0
        %574 = vmatpush1.msra.mxu0 0.0
        %575 = vmatprep.subr.mxu0 0.0
        %576 = vmatpush1.msra.mxu0 0.0
        %577 = vmatprep.subr.mxu0 0.0
        %578 = vmatpush1.msra.mxu0 0.0
        %579 = vmatprep.subr.mxu0 0.0
        %580 = vmatpush1.msra.mxu0 0.0
        %581 = vmatprep.subr.mxu0 0.0
        %582 = vmatpush1.msra.mxu0 0.0
        %583 = vmatprep.subr.mxu0 0.0
        %584 = vmatpush1.msra.mxu0 0.0
        %585 = vmatprep.subr.mxu0 0.0
        %586 = vmatpush1.msra.mxu0 0.0
        %587 = vmatprep.subr.mxu0 0.0
        %588 = vmatpush1.msra.mxu0 0.0
        %589 = vmatprep.subr.mxu0 0.0
        %590 = vmatpush1.msra.mxu0 0.0
        %591 = vmatprep.subr.mxu0 0.0
        %592 = vmatpush1.msra.mxu0 0.0
        %593 = vmatprep.subr.mxu0 0.0
        %594 = vmatpush1.msra.mxu0 0.0
        %595 = vmatprep.subr.mxu0 0.0
        %596 = vmatpush1.msra.mxu0 0.0
        %597 = vmatprep.subr.mxu0 0.0
        %598 = vmatpush1.msra.mxu0 0.0
        %599 = vmatprep.subr.mxu0 0.0
        %600 = vmatpush1.msra.mxu0 0.0
        %601 = vmatprep.subr.mxu0 0.0
        %602 = vmatpush1.msra.mxu0 0.0
        %603 = vmatprep.subr.mxu0 0.0
        %604 = vmatpush1.msra.mxu0 0.0
        %605 = vmatprep.subr.mxu0 0.0
        %606 = vmatpush1.msra.mxu0 0.0
        %607 = vmatprep.subr.mxu0 0.0
        %608 = vmatpush1.msra.mxu0 0.0
        %609 = vmatprep.subr.mxu0 0.0
        %610 = vmatpush1.msra.mxu0 0.0
        %611 = vmatprep.subr.mxu0 0.0
        %612 = vmatpush1.msra.mxu0 0.0
        %613 = vmatprep.subr.mxu0 0.0
        %614 = vmatpush1.msra.mxu0 0.0
        %615 = vmatprep.subr.mxu0 0.0
        %616 = vmatpush1.msra.mxu0 0.0
        %617 = vmatprep.subr.mxu0 0.0
        %618 = vmatpush1.msra.mxu0 0.0
        %619 = vmatprep.subr.mxu0 0.0
        %620 = vmatpush1.msra.mxu0 0.0
        %621 = vmatprep.subr.mxu0 0.0
        %622 = vmatpush1.msra.mxu0 0.0
        %623 = vmatprep.subr.mxu0 0.0
        %624 = vmatpush1.msra.mxu0 0.0
        %625 = vmatprep.subr.mxu0 0.0
        %626 = vmatpush1.msra.mxu0 0.0
        %627 = vmatprep.mubr.f32.mxu0 0.0
        %628 = vmatmul.mubr.f32.gmra.mrb[0].mxu0 %v511
        %v629 = vpop.f32.mrb[0].mxu0
        %v630 = vadd.f32 0.0, %v629
        %v631 = vpop.f32.mrb[0].mxu0
        %v632 = vadd.f32 0.0, %v631
        %633 = vmatprep.mubr.f32.mxu0 0.0
        %634 = vmatmul.mubr.f32.gmra.mrb[0].mxu0 %v514
        %v635 = vpop.f32.mrb[0].mxu0
        %v636 = vadd.f32 0.0, %v635
        %v637 = vpop.f32.mrb[0].mxu0
        %v638 = vadd.f32 0.0, %v637
        %639 = vmatprep.mubr.f32.mxu0 0.0
        %640 = vmatmul.mubr.f32.gmra.mrb[0].mxu0 %v517
        %v641 = vpop.f32.mrb[0].mxu0
        %v642 = vadd.f32 0.0, %v641
        %v643 = vpop.f32.mrb[0].mxu0
        %v644 = vadd.f32 0.0, %v643
        %645 = vmatprep.mubr.f32.mxu0 0.0
        %646 = vmatmul.mubr.f32.gmra.mrb[0].mxu0 %v520
        %v647 = vpop.f32.mrb[0].mxu0
        %v648 = vadd.f32 0.0, %v647
        %v649 = vpop.f32.mrb[0].mxu0
        %v650 = vadd.f32 0.0, %v649
        %651 = vmatprep.mubr.f32.mxu0 0.0
        %652 = vmatmul.mubr.f32.gmra.mrb[0].mxu0 %v523
        %v653 = vpop.f32.mrb[0].mxu0
        %v654 = vadd.f32 0.0, %v653
        %v655 = vpop.f32.mrb[0].mxu0
        %v656 = vadd.f32 0.0, %v655
        %657 = vmatprep.mubr.f32.mxu0 0.0
        %658 = vmatmul.mubr.f32.gmra.mrb[0].mxu0 %v526
        %v659 = vpop.f32.mrb[0].mxu0
        %v660 = vadd.f32 0.0, %v659
        %v661 = vpop.f32.mrb[0].mxu0
        %v662 = vadd.f32 0.0, %v661
        %663 = vmatprep.mubr.f32.mxu0 0.0
        %664 = vmatmul.mubr.f32.gmra.mrb[0].mxu0 %v529
        %v665 = vpop.f32.mrb[0].mxu0
        %v666 = vadd.f32 0.0, %v665
        %v667 = vpop.f32.mrb[0].mxu0
        %v668 = vadd.f32 0.0, %v667
        %669 = vmatprep.mubr.f32.mxu0 0.0
        %670 = vmatmul.mubr.f32.gmra.mrb[0].mxu0 %v532
        %v671 = vpop.f32.mrb[0].mxu0
        %v672 = vadd.f32 0.0, %v671
        %v673 = vpop.f32.mrb[0].mxu0
        %v674 = vadd.f32 0.0, %v673
        %675 = vmatprep.mubr.f32.mxu0 0.0
        %676 = vmatmul.mubr.f32.gmra.mrb[0].mxu0 %v535
        %v677 = vpop.f32.mrb[0].mxu0
        %v678 = vadd.f32 0.0, %v677
        %v679 = vpop.f32.mrb[0].mxu0
        %v680 = vadd.f32 0.0, %v679
        %681 = vmatprep.mubr.f32.mxu0 0.0
        %682 = vmatmul.mubr.f32.gmra.mrb[0].mxu0 %v538
        %v683 = vpop.f32.mrb[0].mxu0
        %v684 = vadd.f32 0.0, %v683
        %v685 = vpop.f32.mrb[0].mxu0
        %v686 = vadd.f32 0.0, %v685
        %687 = vmatprep.mubr.f32.mxu0 0.0
        %688 = vmatmul.mubr.f32.gmra.mrb[0].mxu0 %v541
        %v689 = vpop.f32.mrb[0].mxu0
        %v690 = vadd.f32 0.0, %v689
        %v691 = vpop.f32.mrb[0].mxu0
        %v692 = vadd.f32 0.0, %v691
        %693 = vmatprep.mubr.f32.mxu0 0.0
        %694 = vmatmul.mubr.f32.gmra.mrb[0].mxu0 %v544
        %v695 = vpop.f32.mrb[0].mxu0
        %v696 = vadd.f32 0.0, %v695
        %v697 = vpop.f32.mrb[0].mxu0
        %v698 = vadd.f32 0.0, %v697
        %699 = vmatprep.mubr.f32.mxu0 0.0
        %700 = vmatmul.mubr.f32.gmra.mrb[0].mxu0 %v547
        %v701 = vpop.f32.mrb[0].mxu0
        %v702 = vadd.f32 0.0, %v701
        %v703 = vpop.f32.mrb[0].mxu0
        %v704 = vadd.f32 0.0, %v703
        %705 = vmatprep.mubr.f32.mxu0 0.0
        %706 = vmatmul.mubr.f32.gmra.mrb[0].mxu0 %v550
        %v707 = vpop.f32.mrb[0].mxu0
        %v708 = vadd.f32 0.0, %v707
        %v709 = vpop.f32.mrb[0].mxu0
        %v710 = vadd.f32 0.0, %v709
        %711 = vmatprep.mubr.f32.mxu0 0.0
        %712 = vmatmul.mubr.f32.gmra.mrb[0].mxu0 %v553
        %v713 = vpop.f32.mrb[0].mxu0
        %v714 = vadd.f32 0.0, %v713
        %v715 = vpop.f32.mrb[0].mxu0
        %v716 = vadd.f32 0.0, %v715
        %717 = vmatprep.mubr.f32.mxu0 0.0
        %718 = vmatmul.mubr.f32.gmra.mrb[0].mxu0 %v556
        %v719 = vpop.f32.mrb[0].mxu0
        %v720 = vadd.f32 0.0, %v719
        %v721 = vpop.f32.mrb[0].mxu0
        %v722 = vadd.f32 0.0, %v721
        %723 = vdwg.mxu0
        %v724 = vmax.f32 %v630, %v632
        %725 = vmax.xlane.f32.xlu0 %v724
        %v726 = vpop.xlane.xlu0 %725
        %v727 = vmax.f32 %v636, %v638
        %728 = vmax.xlane.f32.xlu0 %v727
        %v729 = vpop.xlane.xlu0 %728
        %v730 = vmax.f32 %v642, %v644
        %731 = vmax.xlane.f32.xlu0 %v730
        %v732 = vpop.xlane.xlu0 %731
        %v733 = vmax.f32 %v648, %v650
        %734 = vmax.xlane.f32.xlu0 %v733
        %v735 = vpop.xlane.xlu0 %734
        %v736 = vmax.f32 %v654, %v656
        %737 = vmax.xlane.f32.xlu0 %v736
        %v738 = vpop.xlane.xlu0 %737
        %v739 = vmax.f32 %v660, %v662
        %740 = vmax.xlane.f32.xlu0 %v739
        %v741 = vpop.xlane.xlu0 %740
        %v742 = vmax.f32 %v666, %v668
        %743 = vmax.xlane.f32.xlu0 %v742
        %v744 = vpop.xlane.xlu0 %743
        %v745 = vmax.f32 %v672, %v674
        %746 = vmax.xlane.f32.xlu0 %v745
        %v747 = vpop.xlane.xlu0 %746
        %v748 = vmax.f32 %v678, %v680
        %749 = vmax.xlane.f32.xlu0 %v748
        %v750 = vpop.xlane.xlu0 %749
        %v751 = vmax.f32 %v684, %v686
        %752 = vmax.xlane.f32.xlu0 %v751
        %v753 = vpop.xlane.xlu0 %752
        %v754 = vmax.f32 %v690, %v692
        %755 = vmax.xlane.f32.xlu0 %v754
        %v756 = vpop.xlane.xlu0 %755
        %v757 = vmax.f32 %v696, %v698
        %758 = vmax.xlane.f32.xlu0 %v757
        %v759 = vpop.xlane.xlu0 %758
        %v760 = vmax.f32 %v702, %v704
        %761 = vmax.xlane.f32.xlu0 %v760
        %v762 = vpop.xlane.xlu0 %761
        %v763 = vmax.f32 %v708, %v710
        %764 = vmax.xlane.f32.xlu0 %v763
        %v765 = vpop.xlane.xlu0 %764
        %v766 = vmax.f32 %v714, %v716
        %767 = vmax.xlane.f32.xlu0 %v766
        %v768 = vpop.xlane.xlu0 %767
        %v769 = vmax.f32 %v720, %v722
        %770 = vmax.xlane.f32.xlu0 %v769
        %v771 = vpop.xlane.xlu0 %770
        %v772 = vsub.f32 %v630, %v726
        %v773 = vsub.f32 %v632, %v726
        %v774 = vsub.f32 %v636, %v729
        %v775 = vsub.f32 %v638, %v729
        %v776 = vsub.f32 %v642, %v732
        %v777 = vsub.f32 %v644, %v732
        %v778 = vsub.f32 %v648, %v735
        %v779 = vsub.f32 %v650, %v735
        %v780 = vsub.f32 %v654, %v738
        %v781 = vsub.f32 %v656, %v738
        %v782 = vsub.f32 %v660, %v741
        %v783 = vsub.f32 %v662, %v741
        %v784 = vsub.f32 %v666, %v744
        %v785 = vsub.f32 %v668, %v744
        %v786 = vsub.f32 %v672, %v747
        %v787 = vsub.f32 %v674, %v747
        %v788 = vsub.f32 %v678, %v750
        %v789 = vsub.f32 %v680, %v750
        %v790 = vsub.f32 %v684, %v753
        %v791 = vsub.f32 %v686, %v753
        %v792 = vsub.f32 %v690, %v756
        %v793 = vsub.f32 %v692, %v756
        %v794 = vsub.f32 %v696, %v759
        %v795 = vsub.f32 %v698, %v759
        %v796 = vsub.f32 %v702, %v762
        %v797 = vsub.f32 %v704, %v762
        %v798 = vsub.f32 %v708, %v765
        %v799 = vsub.f32 %v710, %v765
        %v800 = vsub.f32 %v714, %v768
        %v801 = vsub.f32 %v716, %v768
        %v802 = vsub.f32 %v720, %v771
        %v803 = vsub.f32 %v722, %v771
        %v804 = vmul.f32 %v772, 1.442695
        %v805 = vpow.pop %v804
        %v806 = vmul.f32 %v773, 1.442695
        %v807 = vpow.pop %v806
        %v808 = vmul.f32 %v774, 1.442695
        %v809 = vpow.pop %v808
        %v810 = vmul.f32 %v775, 1.442695
        %v811 = vpow.pop %v810
        %v812 = vmul.f32 %v776, 1.442695
        %v813 = vpow.pop %v812
        %v814 = vmul.f32 %v777, 1.442695
        %v815 = vpow.pop %v814
        %v816 = vmul.f32 %v778, 1.442695
        %v817 = vpow.pop %v816
        %v818 = vmul.f32 %v779, 1.442695
        %v819 = vpow.pop %v818
        %v820 = vmul.f32 %v780, 1.442695
        %v821 = vpow.pop %v820
        %v822 = vmul.f32 %v781, 1.442695
        %v823 = vpow.pop %v822
        %v824 = vmul.f32 %v782, 1.442695
        %v825 = vpow.pop %v824
        %v826 = vmul.f32 %v783, 1.442695
        %v827 = vpow.pop %v826
        %v828 = vmul.f32 %v784, 1.442695
        %v829 = vpow.pop %v828
        %v830 = vmul.f32 %v785, 1.442695
        %v831 = vpow.pop %v830
        %v832 = vmul.f32 %v786, 1.442695
        %v833 = vpow.pop %v832
        %v834 = vmul.f32 %v787, 1.442695
        %v835 = vpow.pop %v834
        %v836 = vmul.f32 %v788, 1.442695
        %v837 = vpow.pop %v836
        %v838 = vmul.f32 %v789, 1.442695
        %v839 = vpow.pop %v838
        %v840 = vmul.f32 %v790, 1.442695
        %v841 = vpow.pop %v840
        %v842 = vmul.f32 %v791, 1.442695
        %v843 = vpow.pop %v842
        %v844 = vmul.f32 %v792, 1.442695
        %v845 = vpow.pop %v844
        %v846 = vmul.f32 %v793, 1.442695
        %v847 = vpow.pop %v846
        %v848 = vmul.f32 %v794, 1.442695
        %v849 = vpow.pop %v848
        %v850 = vmul.f32 %v795, 1.442695
        %v851 = vpow.pop %v850
        %v852 = vmul.f32 %v796, 1.442695
        %v853 = vpow.pop %v852
        %v854 = vmul.f32 %v797, 1.442695
        %v855 = vpow.pop %v854
        %v856 = vmul.f32 %v798, 1.442695
        %v857 = vpow.pop %v856
        %v858 = vmul.f32 %v799, 1.442695
        %v859 = vpow.pop %v858
        %v860 = vmul.f32 %v800, 1.442695
        %v861 = vpow.pop %v860
        %v862 = vmul.f32 %v801, 1.442695
        %v863 = vpow.pop %v862
        %v864 = vmul.f32 %v802, 1.442695
        %v865 = vpow.pop %v864
        %v866 = vmul.f32 %v803, 1.442695
        %v867 = vpow.pop %v866
        %v868 = vadd.f32 %v805, %v807
        %869 = vadd.xlane.f32.xlu0 %v868
        %v870 = vpop.xlane.xlu0 %869
        %v871 = vadd.f32 %v809, %v811
        %872 = vadd.xlane.f32.xlu0 %v871
        %v873 = vpop.xlane.xlu0 %872
        %v874 = vadd.f32 %v813, %v815
        %875 = vadd.xlane.f32.xlu0 %v874
        %v876 = vpop.xlane.xlu0 %875
        %v877 = vadd.f32 %v817, %v819
        %878 = vadd.xlane.f32.xlu0 %v877
        %v879 = vpop.xlane.xlu0 %878
        %v880 = vadd.f32 %v821, %v823
        %881 = vadd.xlane.f32.xlu0 %v880
        %v882 = vpop.xlane.xlu0 %881
        %v883 = vadd.f32 %v825, %v827
        %884 = vadd.xlane.f32.xlu0 %v883
        %v885 = vpop.xlane.xlu0 %884
        %v886 = vadd.f32 %v829, %v831
        %887 = vadd.xlane.f32.xlu0 %v886
        %v888 = vpop.xlane.xlu0 %887
        %v889 = vadd.f32 %v833, %v835
        %890 = vadd.xlane.f32.xlu0 %v889
        %v891 = vpop.xlane.xlu0 %890
        %v892 = vadd.f32 %v837, %v839
        %893 = vadd.xlane.f32.xlu0 %v892
        %v894 = vpop.xlane.xlu0 %893
        %v895 = vadd.f32 %v841, %v843
        %896 = vadd.xlane.f32.xlu0 %v895
        %v897 = vpop.xlane.xlu0 %896
        %v898 = vadd.f32 %v845, %v847
        %899 = vadd.xlane.f32.xlu0 %v898
        %v900 = vpop.xlane.xlu0 %899
        %v901 = vadd.f32 %v849, %v851
        %902 = vadd.xlane.f32.xlu0 %v901
        %v903 = vpop.xlane.xlu0 %902
        %v904 = vadd.f32 %v853, %v855
        %905 = vadd.xlane.f32.xlu0 %v904
        %v906 = vpop.xlane.xlu0 %905
        %v907 = vadd.f32 %v857, %v859
        %908 = vadd.xlane.f32.xlu0 %v907
        %v909 = vpop.xlane.xlu0 %908
        %v910 = vadd.f32 %v861, %v863
        %911 = vadd.xlane.f32.xlu0 %v910
        %v912 = vpop.xlane.xlu0 %911
        %v913 = vadd.f32 %v865, %v867
        %914 = vadd.xlane.f32.xlu0 %v913
        %v915 = vpop.xlane.xlu0 %914
        %v916 = vrcp.pop %v870
        %v917 = vrcp.pop %v873
        %v918 = vrcp.pop %v876
        %v919 = vrcp.pop %v879
        %v920 = vrcp.pop %v882
        %v921 = vrcp.pop %v885
        %v922 = vrcp.pop %v888
        %v923 = vrcp.pop %v891
        %v924 = vrcp.pop %v894
        %v925 = vrcp.pop %v897
        %v926 = vrcp.pop %v900
        %v927 = vrcp.pop %v903
        %v928 = vrcp.pop %v906
        %v929 = vrcp.pop %v909
        %v930 = vrcp.pop %v912
        %v931 = vrcp.pop %v915
        %v932 = vmul.f32 %v805, %v916
        %v933 = vmul.f32 %v807, %v916
        %v934 = vmul.f32 %v809, %v917
        %v935 = vmul.f32 %v811, %v917
        %v936 = vmul.f32 %v813, %v918
        %v937 = vmul.f32 %v815, %v918
        %v938 = vmul.f32 %v817, %v919
        %v939 = vmul.f32 %v819, %v919
        %v940 = vmul.f32 %v821, %v920
        %v941 = vmul.f32 %v823, %v920
        %v942 = vmul.f32 %v825, %v921
        %v943 = vmul.f32 %v827, %v921
        %v944 = vmul.f32 %v829, %v922
        %v945 = vmul.f32 %v831, %v922
        %v946 = vmul.f32 %v833, %v923
        %v947 = vmul.f32 %v835, %v923
        %v948 = vmul.f32 %v837, %v924
        %v949 = vmul.f32 %v839, %v924
        %v950 = vmul.f32 %v841, %v925
        %v951 = vmul.f32 %v843, %v925
        %v952 = vmul.f32 %v845, %v926
        %v953 = vmul.f32 %v847, %v926
        %v954 = vmul.f32 %v849, %v927
        %v955 = vmul.f32 %v851, %v927
        %v956 = vmul.f32 %v853, %v928
        %v957 = vmul.f32 %v855, %v928
        %v958 = vmul.f32 %v857, %v929
        %v959 = vmul.f32 %v859, %v929
        %v960 = vmul.f32 %v861, %v930
        %v961 = vmul.f32 %v863, %v930
        %v962 = vmul.f32 %v865, %v931
        %v963 = vmul.f32 %v867, %v931
        %964 = vst [vmem:[%s274] sm:$0xff] %v932
        %965 = vst [vmem:[%s274 + $0x8] sm:$0xff] %v933
        %966 = vst [vmem:[%s274 + $0x10] sm:$0xff] %v934
        %967 = vst [vmem:[%s274 + $0x18] sm:$0xff] %v935
        %968 = vst [vmem:[%s274 + $0x20] sm:$0xff] %v936
        %969 = vst [vmem:[%s274 + $0x28] sm:$0xff] %v937
        %970 = vst [vmem:[%s274 + $0x30] sm:$0xff] %v938
        %971 = vst [vmem:[%s274 + $0x38] sm:$0xff] %v939
        %972 = vst [vmem:[%s274 + $0x40] sm:$0xff] %v940
        %973 = vst [vmem:[%s274 + $0x48] sm:$0xff] %v941
        %974 = vst [vmem:[%s274 + $0x50] sm:$0xff] %v942
        %975 = vst [vmem:[%s274 + $0x58] sm:$0xff] %v943
        %976 = vst [vmem:[%s274 + $0x60] sm:$0xff] %v944
        %977 = vst [vmem:[%s274 + $0x68] sm:$0xff] %v945
        %978 = vst [vmem:[%s274 + $0x70] sm:$0xff] %v946
        %979 = vst [vmem:[%s274 + $0x78] sm:$0xff] %v947
        %980 = vst [vmem:[%s274 + $0x80] sm:$0xff] %v948
        %981 = vst [vmem:[%s274 + $0x88] sm:$0xff] %v949
        %982 = vst [vmem:[%s274 + $0x90] sm:$0xff] %v950
        %983 = vst [vmem:[%s274 + $0x98] sm:$0xff] %v951
        %984 = vst [vmem:[%s274 + $0xa0] sm:$0xff] %v952
        %985 = vst [vmem:[%s274 + $0xa8] sm:$0xff] %v953
        %986 = vst [vmem:[%s274 + $0xb0] sm:$0xff] %v954
        %987 = vst [vmem:[%s274 + $0xb8] sm:$0xff] %v955
        %988 = vst [vmem:[%s274 + $0xc0] sm:$0xff] %v956
        %989 = vst [vmem:[%s274 + $0xc8] sm:$0xff] %v957
        %990 = vst [vmem:[%s274 + $0xd0] sm:$0xff] %v958
        %991 = vst [vmem:[%s274 + $0xd8] sm:$0xff] %v959
        %992 = vst [vmem:[%s274 + $0xe0] sm:$0xff] %v960
        %993 = vst [vmem:[%s274 + $0xe8] sm:$0xff] %v961
        %994 = vst [vmem:[%s274 + $0xf0] sm:$0xff] %v962
        %995 = vst [vmem:[%s274 + $0xf8] sm:$0xff] %v963
        %v996 = vld [vmem:[#allocation4] sm:$0xff]
        %v997 = vld [vmem:[#allocation4 + $0x8] sm:$0xff]
        %v998 = vld [vmem:[#allocation4 + $0x10] sm:$0xff]
        %v999 = vld [vmem:[#allocation4 + $0x18] sm:$0xff]
        %v1000 = vld [vmem:[#allocation4 + $0x20] sm:$0xff]
        %v1001 = vld [vmem:[#allocation4 + $0x28] sm:$0xff]
        %v1002 = vld [vmem:[#allocation4 + $0x30] sm:$0xff]
        %v1003 = vld [vmem:[#allocation4 + $0x38] sm:$0xff]
        %1004 = vmatprep.subr.mxu0 %v933
        %1005 = vmatpush1.xpose.msra.mxu0 %v932
        %1006 = vmatprep.subr.mxu0 %v935
        %1007 = vmatpush1.xpose.msra.mxu0 %v934
        %1008 = vmatprep.subr.mxu0 %v937
        %1009 = vmatpush1.xpose.msra.mxu0 %v936
        %1010 = vmatprep.subr.mxu0 %v939
        %1011 = vmatpush1.xpose.msra.mxu0 %v938
        %1012 = vmatprep.subr.mxu0 %v941
        %1013 = vmatpush1.xpose.msra.mxu0 %v940
        %1014 = vmatprep.subr.mxu0 %v943
        %1015 = vmatpush1.xpose.msra.mxu0 %v942
        %1016 = vmatprep.subr.mxu0 %v945
        %1017 = vmatpush1.xpose.msra.mxu0 %v944
        %1018 = vmatprep.subr.mxu0 %v947
        %1019 = vmatpush1.xpose.msra.mxu0 %v946
        %1020 = vmatprep.subr.mxu0 %v949
        %1021 = vmatpush1.xpose.msra.mxu0 %v948
        %1022 = vmatprep.subr.mxu0 %v951
        %1023 = vmatpush1.xpose.msra.mxu0 %v950
        %1024 = vmatprep.subr.mxu0 %v953
        %1025 = vmatpush1.xpose.msra.mxu0 %v952
        %1026 = vmatprep.subr.mxu0 %v955
        %1027 = vmatpush1.xpose.msra.mxu0 %v954
        %1028 = vmatprep.subr.mxu0 %v957
        %1029 = vmatpush1.xpose.msra.mxu0 %v956
        %1030 = vmatprep.subr.mxu0 %v959
        %1031 = vmatpush1.xpose.msra.mxu0 %v958
        %1032 = vmatprep.subr.mxu0 %v961
        %1033 = vmatpush1.xpose.msra.mxu0 %v960
        %1034 = vmatprep.subr.mxu0 %v963
        %1035 = vmatpush1.xpose.msra.mxu0 %v962
        %1036 = vmatprep.subr.mxu0 0.0
        %1037 = vmatpush1.xpose.msra.mxu0 0.0
        %1038 = vmatprep.subr.mxu0 0.0
        %1039 = vmatpush1.xpose.msra.mxu0 0.0
        %1040 = vmatprep.subr.mxu0 0.0
        %1041 = vmatpush1.xpose.msra.mxu0 0.0
        %1042 = vmatprep.subr.mxu0 0.0
        %1043 = vmatpush1.xpose.msra.mxu0 0.0
        %1044 = vmatprep.subr.mxu0 0.0
        %1045 = vmatpush1.xpose.msra.mxu0 0.0
        %1046 = vmatprep.subr.mxu0 0.0
        %1047 = vmatpush1.xpose.msra.mxu0 0.0
        %1048 = vmatprep.subr.mxu0 0.0
        %1049 = vmatpush1.xpose.msra.mxu0 0.0
        %1050 = vmatprep.subr.mxu0 0.0
        %1051 = vmatpush1.xpose.msra.mxu0 0.0
        %1052 = vmatprep.subr.mxu0 0.0
        %1053 = vmatpush1.xpose.msra.mxu0 0.0
        %1054 = vmatprep.subr.mxu0 0.0
        %1055 = vmatpush1.xpose.msra.mxu0 0.0
        %1056 = vmatprep.subr.mxu0 0.0
        %1057 = vmatpush1.xpose.msra.mxu0 0.0
        %1058 = vmatprep.subr.mxu0 0.0
        %1059 = vmatpush1.xpose.msra.mxu0 0.0
        %1060 = vmatprep.subr.mxu0 0.0
        %1061 = vmatpush1.xpose.msra.mxu0 0.0
        %1062 = vmatprep.subr.mxu0 0.0
        %1063 = vmatpush1.xpose.msra.mxu0 0.0
        %1064 = vmatprep.subr.mxu0 0.0
        %1065 = vmatpush1.xpose.msra.mxu0 0.0
        %1066 = vmatprep.subr.mxu0 0.0
        %1067 = vmatpush1.xpose.msra.mxu0 0.0
        %1068 = vmatprep.mubr.f32.mxu0 %v997
        %1069 = vmatmul.mubr.f32.gmra.mrb[0].mxu0 %v996
        %v1070 = vpop.f32.mrb[0].mxu0
        %v1071 = vadd.f32 0.0, %v1070
        %v1072 = vpop.f32.mrb[0].mxu0
        %1073 = vmatprep.mubr.f32.mxu0 %v999
        %1074 = vmatmul.mubr.f32.gmra.mrb[0].mxu0 %v998
        %v1075 = vpop.f32.mrb[0].mxu0
        %v1076 = vadd.f32 0.0, %v1075
        %v1077 = vpop.f32.mrb[0].mxu0
        %1078 = vmatprep.mubr.f32.mxu0 %v1001
        %1079 = vmatmul.mubr.f32.gmra.mrb[0].mxu0 %v1000
        %v1080 = vpop.f32.mrb[0].mxu0
        %v1081 = vadd.f32 0.0, %v1080
        %v1082 = vpop.f32.mrb[0].mxu0
        %1083 = vmatprep.mubr.f32.mxu0 %v1003
        %1084 = vmatmul.mubr.f32.gmra.mrb[0].mxu0 %v1002
        %v1085 = vpop.f32.mrb[0].mxu0
        %v1086 = vadd.f32 0.0, %v1085
        %v1087 = vpop.f32.mrb[0].mxu0
        %1088 = vdwg.mxu0
        %s1089 = sld [smem:[#allocation5]]
        %v1090 = vstv %s1089
        %v1091 = vmul.f32 %v1090, %v1071
        %v1092 = vmul.f32 %v1090, %v1076
        %v1093 = vmul.f32 %v1090, %v1081
        %v1094 = vmul.f32 %v1090, %v1086
        %v1095 = vld [vmem:[%s243] sm:$0xff]
        %v1096 = vld [vmem:[%s243 + $0x8] sm:$0xff]
        %v1097 = vld [vmem:[%s243 + $0x10] sm:$0xff]
        %v1098 = vld [vmem:[%s243 + $0x18] sm:$0xff]
        %v1099 = vadd.f32 %v1091, %v1095
        %v1100 = vadd.f32 %v1092, %v1096
        %v1101 = vadd.f32 %v1093, %v1097
        %v1102 = vadd.f32 %v1094, %v1098
        %1103 = vst [vmem:[%s267] sm:$0xff] %v1099
        %1104 = vst [vmem:[%s267 + $0x8] sm:$0xff] %v1100
        %1105 = vst [vmem:[%s267 + $0x10] sm:$0xff] %v1101
        %1106 = vst [vmem:[%s267 + $0x18] sm:$0xff] %v1102
        %s1107 = sand.u32 %s141, 1
        %s1108 = scalar_lea.sflag [#allocation8], %s1107
        %s1109 = sand.u32 %s141, 1
        %s1110 = smul.addr %s1109, 32
        %s1111 = scalar_lea.vmem [#allocation9], %s1110
        %s1112 = sand.u32 %s169, 1
        %s1113 = scalar_lea.sflag [#allocation11], %s1112
        %s1114 = sand.u32 %s169, 1
        %s1115 = smul.addr %s1114, 256
        %s1116 = scalar_lea.vmem [#allocation10], %s1115
        // Predicated region
        $region50: #{tpu_custom_call.1} parent=35 // pred_check
          %p1117 = pneg %p151
        $region51: #{tpu_custom_call.1} parent=35 // pred_check_branch
          %1119 = sbr.rel (%p1117) target = $region53
        $region52: #{tpu_custom_call.1} parent=35 // pred_region
          %s1121 = ssub.s32 512, 512
          %1122 = vsyncadd %s1108, %s1121
          %s1123 = smul.addr %s32, 8
          %s1124 = sadd.s32 %s33, %s1123
          %s1125 = smul.addr %s1124, 128
          %s1126 = scalar_lea.hbm %s5, %s1125
          %s1127 = sshll.u32 %s1111, 4
          %s1128 = int_to_ptr.vmem [resolvable:$true] %s1127
          %1133 = dma.vmem_to_hbm [thread:$0]  %s1128, 512, %s1126, %s1108, 128, 256, 8
        $region53: #{tpu_custom_call.1} parent=35 // pred_fallthru
          _
        // Predicated region
        $region54: #{tpu_custom_call.1} parent=35 // pred_check
          %p1134 = pneg %p179
        $region55: #{tpu_custom_call.1} parent=35 // pred_check_branch
          %1136 = sbr.rel (%p1134) target = $region57
        $region56: #{tpu_custom_call.1} parent=35 // pred_region
          %s1137 = smul.u32 16, %s33
          %s1139 = ssub.s32 4096, 4096
          %1140 = vsyncadd %s1113, %s1139
          %s1141 = smul.addr %s1137, 2
          %s1142 = smul.addr %s32, 64
          %s1143 = sadd.s32 %s1141, %s1142
          %s1144 = smul.addr %s1143, 128
          %s1145 = scalar_lea.hbm %s6, %s1144
          %s1146 = sshll.u32 %s1116, 4
          %s1147 = int_to_ptr.vmem [resolvable:$true] %s1146
          %1152 = dma.vmem_to_hbm [thread:$0]  %s1147, 4096, %s1145, %s1113, 256, 256, 16
        $region57: #{tpu_custom_call.1} parent=35 // pred_fallthru
          _
      $region36: #{tpu_custom_call.1} parent=5 // pred_fallthru
        _
      %p1153 = scmp.le.s32.totalorder 2, %s23
      // Predicated region
      $region58: #{tpu_custom_call.1} parent=5 // pred_check
        %p1154 = pneg %p1153
      $region59: #{tpu_custom_call.1} parent=5 // pred_check_branch
        %1156 = sbr.rel (%p1154) target = $region61
      $region60: #{tpu_custom_call.1} parent=5 // pred_region
        %s1157 = ssub.s32 %s23, 2
        // Predicated region
        $region62: #{tpu_custom_call.1} parent=60 // pred_check
          %p1158 = pneg %p157
        $region63: #{tpu_custom_call.1} parent=60 // pred_check_branch
          %1160 = sbr.rel (%p1158) target = $region65
        $region64: #{tpu_custom_call.1} parent=60 // pred_region
          %s1161 = sand.u32 %s142, 1
          %s1162 = scalar_lea.sflag [#allocation8], %s1161
          %s1163 = sand.u32 %s142, 1
          %s1164 = smul.addr %s1163, 32
          %s1165 = scalar_lea.vmem [#allocation9], %s1164
          %1166 = dma.done %s1162, 512
        $region65: #{tpu_custom_call.1} parent=60 // pred_fallthru
          _
        // Predicated region
        $region66: #{tpu_custom_call.1} parent=60 // pred_check
          %p1167 = pneg %p185
        $region67: #{tpu_custom_call.1} parent=60 // pred_check_branch
          %1169 = sbr.rel (%p1167) target = $region69
        $region68: #{tpu_custom_call.1} parent=60 // pred_region
          %s1170 = sand.u32 %s170, 1
          %s1171 = scalar_lea.sflag [#allocation11], %s1170
          %s1172 = sand.u32 %s170, 1
          %s1173 = smul.addr %s1172, 256
          %s1174 = scalar_lea.vmem [#allocation10], %s1173
          %1175 = dma.done %s1171, 4096
        $region69: #{tpu_custom_call.1} parent=60 // pred_fallthru
          _
      $region61: #{tpu_custom_call.1} parent=5 // pred_fallthru
        _
    $region6: #{tpu_custom_call.1} parent=1 // loop_footer
      %s27 = sadd.s32 1, %s23
    $region7: #{tpu_custom_call.1} parent=1 // loop_footer_branch
      %22 = sbr.rel target = $region3
    $region8: #{tpu_custom_call.1} parent=1 // loop_exit
      _
    %1176 = vsyncpa [#allocation7], 1
    %s1177 = scalar_lea.sflag [#allocation7], 1
    %1178 = vsyncpa %s1177, 1
    %1179 = vsyncpa [#allocation8], 1
    %s1180 = scalar_lea.sflag [#allocation8], 1
    %1181 = vsyncpa %s1180, 1
    %1182 = vsyncpa [#allocation11], 1
    %s1183 = scalar_lea.sflag [#allocation11], 1
    %1184 = vsyncpa %s1183, 1

</llo_original>
